<compile_context>
chip_gen: v7x
topology: tpu7x:2x2x1
jax: 0.10.0
libtpu: 0.0.40
codegen_flags: <defaults>
</compile_context>

<pallas_src>
import jax
import jax.numpy as jnp
from jax import lax
from jax.experimental import pallas as pl
from jax.experimental.pallas import tpu as pltpu

IN = 2       # layer_1 in_features
H1 = 10      # layer_1 out_features (== folded layer in_features)
OUT = 1      # folded (layer_3 . layer_2) out_features
SUB = 8      # f32 sublanes per vreg
LANES = 128  # lanes per vreg

# Flat SMEM parameter layout: [w1 (20) | b1 (10) | w23 (10) | b23 (1)]
_W1_OFF = 0
_B1_OFF = _W1_OFF + IN * H1        # 20
_W23_OFF = _B1_OFF + H1            # 30
_B23_OFF = _W23_OFF + H1           # 40
N_PARAMS = _B23_OFF + OUT          # 41


def mlp_kernel(p_ref, x_ref, o_ref):
    """p_ref: (41,) f32 SMEM. x_ref: (2, BR, 128) f32 VMEM. o_ref: (1, BR, 128).

    Pure VPU path on full (8,128) vregs:
        y = b23 + sum_j w23[j] * relu(w1[j,0]*x0 + w1[j,1]*x1 + b1[j])
    """
    br = x_ref.shape[1]
    strip = 32 if (br >= 32 and br % 32 == 0) else SUB   # sublane rows per strip
    n_strips = br // strip

    def body(s, carry):
        off = pl.multiple_of(s * strip, strip)
        x0 = x_ref[0, pl.ds(off, strip), :]              # (strip, 128)
        x1 = x_ref[1, pl.ds(off, strip), :]              # (strip, 128)
        y = jnp.full((strip, LANES), p_ref[_B23_OFF], jnp.float32)
        for j in range(H1):
            hj = (x0 * p_ref[_W1_OFF + 2 * j]
                  + x1 * p_ref[_W1_OFF + 2 * j + 1]
                  + p_ref[_B1_OFF + j])
            y = y + jnp.maximum(hj, 0.0) * p_ref[_W23_OFF + j]
        o_ref[0, pl.ds(off, strip), :] = y.astype(o_ref.dtype)
        return carry

    lax.fori_loop(0, n_strips, body, 0, unroll=True)


def circle_model_v3(x, w1, b1, w2, b2, w3, b3, *, block_rows=256):
    """Forward pass identical to the PyTorch module.

    x : (N, 2) float32
    w1: (10, 2), b1: (10,)   -- PyTorch nn.Linear layout (out_features, in_features)
    w2: (10,10), b2: (10,)
    w3: (1, 10), b3: (1,)
    returns (N, 1) float32
    """
    n = x.shape[0]

    # Exact host-side fold of layer_2 / layer_3 (no nonlinearity between them).
    w1f = w1.astype(jnp.float32)
    b1f = b1.astype(jnp.float32)
    w23 = (w3.astype(jnp.float32) @ w2.astype(jnp.float32)).reshape(-1)      # (10,)
    b23 = (w3.astype(jnp.float32) @ b2.astype(jnp.float32)
           + b3.astype(jnp.float32)).reshape(-1)                             # (1,)
    params = jnp.concatenate(
        [w1f.reshape(-1), b1f.reshape(-1), w23, b23]).astype(jnp.float32)    # (41,)

    # Batch layout: rows of 128 lanes; `br` sublane-rows per grid step.
    rows_needed = max(SUB, -(-n // LANES))
    br = min(block_rows, max(SUB, rows_needed // 2))     # keep grid >= 2 when possible (v7x)
    br = max(SUB, (br // SUB) * SUB)                     # multiple of 8 sublanes
    if br >= 32:
        br = (br // 32) * 32                             # match in-kernel strip size
    rows_total = -(-rows_needed // br) * br
    n_pad = rows_total * LANES
    grid = rows_total // br

    # Single transpose + pad + reshape (no zero-fill + scatter pass).
    x_t = jnp.pad(x.T.astype(jnp.float32), ((0, 0), (0, n_pad - n)))
    x_t = x_t.reshape(IN, rows_total, LANES)             # (2, rows_total, 128)

    y_t = pl.pallas_call(
        mlp_kernel,
        out_shape=jax.ShapeDtypeStruct((OUT, rows_total, LANES), jnp.float32),
        grid=(grid,),
        in_specs=[
            pl.BlockSpec(memory_space=pltpu.MemorySpace.SMEM),        # params (41,) scalars
            pl.BlockSpec((IN, br, LANES), lambda i: (0, i, 0)),       # x block
        ],
        out_specs=pl.BlockSpec((OUT, br, LANES), lambda i: (0, i, 0)),
        compiler_params=pltpu.CompilerParams(
            dimension_semantics=("parallel",)),          # shard batch grid across TCs (v7x)
    )(params, x_t)

    return y_t.reshape(-1)[:n].reshape(n, OUT)           # back to (N, 1)


def init_params(key):
    # Mimics nn.Linear's U(-1/sqrt(fan_in), 1/sqrt(fan_in)) init.
    ks = jax.random.split(key, 6)

    def linear(kw, kb, fan_in, fan_out):
        bound = 1.0 / jnp.sqrt(jnp.float32(fan_in))
        w = jax.random.uniform(kw, (fan_out, fan_in), jnp.float32, -bound, bound)
        b = jax.random.uniform(kb, (fan_out,), jnp.float32, -bound, bound)
        return w, b

    w1, b1 = linear(ks[0], ks[1], IN, H1)
    w2, b2 = linear(ks[2], ks[3], H1, H1)
    w3, b3 = linear(ks[4], ks[5], H1, OUT)
    return w1, b1, w2, b2, w3, b3


if __name__ == "__main__":
    key = jax.random.PRNGKey(0)
    kx, kp = jax.random.split(key)
    batch = 2048                      # 16 sublane-rows of 128 lanes -> grid of 2 blocks
    x = jax.random.normal(kx, (batch, IN), jnp.float32)
    w1, b1, w2, b2, w3, b3 = init_params(kp)

    out = circle_model_v3(x, w1, b1, w2, b2, w3, b3)
    out = jax.block_until_ready(out)

    # Reference: same math as the PyTorch forward (ReLU only after layer_1).
    h_ref = jnp.maximum(x @ w1.T + b1, 0.0)
    ref = (h_ref @ w2.T + b2) @ w3.T + b3
    assert out.shape == (batch, OUT)
    assert jnp.allclose(out, ref, atol=1e-5, rtol=1e-5), "mismatch vs. reference"

    print("KERNEL_OK")
</pallas_src>

<mosaic_0001>
module attributes {stable_mosaic.version = 11 : i64} {
  func.func @mlp_kernel(%arg0: i32, %arg1: memref<41xf32, #tpu.memory_space<smem>>, %arg2: memref<2x8x128xf32, #tpu.memory_space<vmem>>, %arg3: memref<1x8x128xf32, #tpu.memory_space<vmem>>) attributes {dimension_semantics = [#tpu.dimension_semantics<parallel>], iteration_bounds = array<i64: 2>, scalar_prefetch = 0 : i64, scratch_operands = 0 : i64, tpu.core_type = #tpu.core_type<tc>, window_params = [{transform_indices = @transform_0, window_bounds = array<i64: 41>}, {transform_indices = @transform_1, window_bounds = array<i64: 2, 8, 128>}, {transform_indices = @transform_2, window_bounds = array<i64: 1, 8, 128>}]} {
    %c0_i32 = arith.constant 0 : i32
    %c8_i32 = arith.constant 8 : i32
    %0 = arith.muli %c0_i32, %c8_i32 : i32
    %1 = tpu.assume_multiple %0, 8 : i32
    %c0 = arith.constant 0 : index
    %2 = arith.index_cast %1 : i32 to index
    %c0_0 = arith.constant 0 : index
    %3 = vector.load %arg2[%c0, %2, %c0_0] : memref<2x8x128xf32, #tpu.memory_space<vmem>>, vector<1x8x128xf32>
    %4 = vector.shape_cast %3 : vector<1x8x128xf32> to vector<8x128xf32>
    %c1 = arith.constant 1 : index
    %5 = arith.index_cast %1 : i32 to index
    %c0_1 = arith.constant 0 : index
    %6 = vector.load %arg2[%c1, %5, %c0_1] : memref<2x8x128xf32, #tpu.memory_space<vmem>>, vector<1x8x128xf32>
    %7 = vector.shape_cast %6 : vector<1x8x128xf32> to vector<8x128xf32>
    %c40 = arith.constant 40 : index
    %8 = memref.load %arg1[%c40] : memref<41xf32, #tpu.memory_space<smem>>
    %9 = vector.broadcast %8 : f32 to vector<8x128xf32>
    %c0_2 = arith.constant 0 : index
    %10 = memref.load %arg1[%c0_2] : memref<41xf32, #tpu.memory_space<smem>>
    %11 = vector.broadcast %10 : f32 to vector<8x128xf32>
    %12 = arith.mulf %4, %11 : vector<8x128xf32>
    %c1_3 = arith.constant 1 : index
    %13 = memref.load %arg1[%c1_3] : memref<41xf32, #tpu.memory_space<smem>>
    %14 = vector.broadcast %13 : f32 to vector<8x128xf32>
    %15 = arith.mulf %7, %14 : vector<8x128xf32>
    %16 = arith.addf %12, %15 : vector<8x128xf32>
    %c20 = arith.constant 20 : index
    %17 = memref.load %arg1[%c20] : memref<41xf32, #tpu.memory_space<smem>>
    %18 = vector.broadcast %17 : f32 to vector<8x128xf32>
    %19 = arith.addf %16, %18 : vector<8x128xf32>
    %cst = arith.constant 0.000000e+00 : f32
    %20 = vector.broadcast %cst : f32 to vector<8x128xf32>
    %21 = arith.maximumf %19, %20 : vector<8x128xf32>
    %c30 = arith.constant 30 : index
    %22 = memref.load %arg1[%c30] : memref<41xf32, #tpu.memory_space<smem>>
    %23 = vector.broadcast %22 : f32 to vector<8x128xf32>
    %24 = arith.mulf %21, %23 : vector<8x128xf32>
    %25 = arith.addf %9, %24 : vector<8x128xf32>
    %c2 = arith.constant 2 : index
    %26 = memref.load %arg1[%c2] : memref<41xf32, #tpu.memory_space<smem>>
    %27 = vector.broadcast %26 : f32 to vector<8x128xf32>
    %28 = arith.mulf %4, %27 : vector<8x128xf32>
    %c3 = arith.constant 3 : index
    %29 = memref.load %arg1[%c3] : memref<41xf32, #tpu.memory_space<smem>>
    %30 = vector.broadcast %29 : f32 to vector<8x128xf32>
    %31 = arith.mulf %7, %30 : vector<8x128xf32>
    %32 = arith.addf %28, %31 : vector<8x128xf32>
    %c21 = arith.constant 21 : index
    %33 = memref.load %arg1[%c21] : memref<41xf32, #tpu.memory_space<smem>>
    %34 = vector.broadcast %33 : f32 to vector<8x128xf32>
    %35 = arith.addf %32, %34 : vector<8x128xf32>
    %cst_4 = arith.constant 0.000000e+00 : f32
    %36 = vector.broadcast %cst_4 : f32 to vector<8x128xf32>
    %37 = arith.maximumf %35, %36 : vector<8x128xf32>
    %c31 = arith.constant 31 : index
    %38 = memref.load %arg1[%c31] : memref<41xf32, #tpu.memory_space<smem>>
    %39 = vector.broadcast %38 : f32 to vector<8x128xf32>
    %40 = arith.mulf %37, %39 : vector<8x128xf32>
    %41 = arith.addf %25, %40 : vector<8x128xf32>
    %c4 = arith.constant 4 : index
    %42 = memref.load %arg1[%c4] : memref<41xf32, #tpu.memory_space<smem>>
    %43 = vector.broadcast %42 : f32 to vector<8x128xf32>
    %44 = arith.mulf %4, %43 : vector<8x128xf32>
    %c5 = arith.constant 5 : index
    %45 = memref.load %arg1[%c5] : memref<41xf32, #tpu.memory_space<smem>>
    %46 = vector.broadcast %45 : f32 to vector<8x128xf32>
    %47 = arith.mulf %7, %46 : vector<8x128xf32>
    %48 = arith.addf %44, %47 : vector<8x128xf32>
    %c22 = arith.constant 22 : index
    %49 = memref.load %arg1[%c22] : memref<41xf32, #tpu.memory_space<smem>>
    %50 = vector.broadcast %49 : f32 to vector<8x128xf32>
    %51 = arith.addf %48, %50 : vector<8x128xf32>
    %cst_5 = arith.constant 0.000000e+00 : f32
    %52 = vector.broadcast %cst_5 : f32 to vector<8x128xf32>
    %53 = arith.maximumf %51, %52 : vector<8x128xf32>
    %c32 = arith.constant 32 : index
    %54 = memref.load %arg1[%c32] : memref<41xf32, #tpu.memory_space<smem>>
    %55 = vector.broadcast %54 : f32 to vector<8x128xf32>
    %56 = arith.mulf %53, %55 : vector<8x128xf32>
    %57 = arith.addf %41, %56 : vector<8x128xf32>
    %c6 = arith.constant 6 : index
    %58 = memref.load %arg1[%c6] : memref<41xf32, #tpu.memory_space<smem>>
    %59 = vector.broadcast %58 : f32 to vector<8x128xf32>
    %60 = arith.mulf %4, %59 : vector<8x128xf32>
    %c7 = arith.constant 7 : index
    %61 = memref.load %arg1[%c7] : memref<41xf32, #tpu.memory_space<smem>>
    %62 = vector.broadcast %61 : f32 to vector<8x128xf32>
    %63 = arith.mulf %7, %62 : vector<8x128xf32>
    %64 = arith.addf %60, %63 : vector<8x128xf32>
    %c23 = arith.constant 23 : index
    %65 = memref.load %arg1[%c23] : memref<41xf32, #tpu.memory_space<smem>>
    %66 = vector.broadcast %65 : f32 to vector<8x128xf32>
    %67 = arith.addf %64, %66 : vector<8x128xf32>
    %cst_6 = arith.constant 0.000000e+00 : f32
    %68 = vector.broadcast %cst_6 : f32 to vector<8x128xf32>
    %69 = arith.maximumf %67, %68 : vector<8x128xf32>
    %c33 = arith.constant 33 : index
    %70 = memref.load %arg1[%c33] : memref<41xf32, #tpu.memory_space<smem>>
    %71 = vector.broadcast %70 : f32 to vector<8x128xf32>
    %72 = arith.mulf %69, %71 : vector<8x128xf32>
    %73 = arith.addf %57, %72 : vector<8x128xf32>
    %c8 = arith.constant 8 : index
    %74 = memref.load %arg1[%c8] : memref<41xf32, #tpu.memory_space<smem>>
    %75 = vector.broadcast %74 : f32 to vector<8x128xf32>
    %76 = arith.mulf %4, %75 : vector<8x128xf32>
    %c9 = arith.constant 9 : index
    %77 = memref.load %arg1[%c9] : memref<41xf32, #tpu.memory_space<smem>>
    %78 = vector.broadcast %77 : f32 to vector<8x128xf32>
    %79 = arith.mulf %7, %78 : vector<8x128xf32>
    %80 = arith.addf %76, %79 : vector<8x128xf32>
    %c24 = arith.constant 24 : index
    %81 = memref.load %arg1[%c24] : memref<41xf32, #tpu.memory_space<smem>>
    %82 = vector.broadcast %81 : f32 to vector<8x128xf32>
    %83 = arith.addf %80, %82 : vector<8x128xf32>
    %cst_7 = arith.constant 0.000000e+00 : f32
    %84 = vector.broadcast %cst_7 : f32 to vector<8x128xf32>
    %85 = arith.maximumf %83, %84 : vector<8x128xf32>
    %c34 = arith.constant 34 : index
    %86 = memref.load %arg1[%c34] : memref<41xf32, #tpu.memory_space<smem>>
    %87 = vector.broadcast %86 : f32 to vector<8x128xf32>
    %88 = arith.mulf %85, %87 : vector<8x128xf32>
    %89 = arith.addf %73, %88 : vector<8x128xf32>
    %c10 = arith.constant 10 : index
    %90 = memref.load %arg1[%c10] : memref<41xf32, #tpu.memory_space<smem>>
    %91 = vector.broadcast %90 : f32 to vector<8x128xf32>
    %92 = arith.mulf %4, %91 : vector<8x128xf32>
    %c11 = arith.constant 11 : index
    %93 = memref.load %arg1[%c11] : memref<41xf32, #tpu.memory_space<smem>>
    %94 = vector.broadcast %93 : f32 to vector<8x128xf32>
    %95 = arith.mulf %7, %94 : vector<8x128xf32>
    %96 = arith.addf %92, %95 : vector<8x128xf32>
    %c25 = arith.constant 25 : index
    %97 = memref.load %arg1[%c25] : memref<41xf32, #tpu.memory_space<smem>>
    %98 = vector.broadcast %97 : f32 to vector<8x128xf32>
    %99 = arith.addf %96, %98 : vector<8x128xf32>
    %cst_8 = arith.constant 0.000000e+00 : f32
    %100 = vector.broadcast %cst_8 : f32 to vector<8x128xf32>
    %101 = arith.maximumf %99, %100 : vector<8x128xf32>
    %c35 = arith.constant 35 : index
    %102 = memref.load %arg1[%c35] : memref<41xf32, #tpu.memory_space<smem>>
    %103 = vector.broadcast %102 : f32 to vector<8x128xf32>
    %104 = arith.mulf %101, %103 : vector<8x128xf32>
    %105 = arith.addf %89, %104 : vector<8x128xf32>
    %c12 = arith.constant 12 : index
    %106 = memref.load %arg1[%c12] : memref<41xf32, #tpu.memory_space<smem>>
    %107 = vector.broadcast %106 : f32 to vector<8x128xf32>
    %108 = arith.mulf %4, %107 : vector<8x128xf32>
    %c13 = arith.constant 13 : index
    %109 = memref.load %arg1[%c13] : memref<41xf32, #tpu.memory_space<smem>>
    %110 = vector.broadcast %109 : f32 to vector<8x128xf32>
    %111 = arith.mulf %7, %110 : vector<8x128xf32>
    %112 = arith.addf %108, %111 : vector<8x128xf32>
    %c26 = arith.constant 26 : index
    %113 = memref.load %arg1[%c26] : memref<41xf32, #tpu.memory_space<smem>>
    %114 = vector.broadcast %113 : f32 to vector<8x128xf32>
    %115 = arith.addf %112, %114 : vector<8x128xf32>
    %cst_9 = arith.constant 0.000000e+00 : f32
    %116 = vector.broadcast %cst_9 : f32 to vector<8x128xf32>
    %117 = arith.maximumf %115, %116 : vector<8x128xf32>
    %c36 = arith.constant 36 : index
    %118 = memref.load %arg1[%c36] : memref<41xf32, #tpu.memory_space<smem>>
    %119 = vector.broadcast %118 : f32 to vector<8x128xf32>
    %120 = arith.mulf %117, %119 : vector<8x128xf32>
    %121 = arith.addf %105, %120 : vector<8x128xf32>
    %c14 = arith.constant 14 : index
    %122 = memref.load %arg1[%c14] : memref<41xf32, #tpu.memory_space<smem>>
    %123 = vector.broadcast %122 : f32 to vector<8x128xf32>
    %124 = arith.mulf %4, %123 : vector<8x128xf32>
    %c15 = arith.constant 15 : index
    %125 = memref.load %arg1[%c15] : memref<41xf32, #tpu.memory_space<smem>>
    %126 = vector.broadcast %125 : f32 to vector<8x128xf32>
    %127 = arith.mulf %7, %126 : vector<8x128xf32>
    %128 = arith.addf %124, %127 : vector<8x128xf32>
    %c27 = arith.constant 27 : index
    %129 = memref.load %arg1[%c27] : memref<41xf32, #tpu.memory_space<smem>>
    %130 = vector.broadcast %129 : f32 to vector<8x128xf32>
    %131 = arith.addf %128, %130 : vector<8x128xf32>
    %cst_10 = arith.constant 0.000000e+00 : f32
    %132 = vector.broadcast %cst_10 : f32 to vector<8x128xf32>
    %133 = arith.maximumf %131, %132 : vector<8x128xf32>
    %c37 = arith.constant 37 : index
    %134 = memref.load %arg1[%c37] : memref<41xf32, #tpu.memory_space<smem>>
    %135 = vector.broadcast %134 : f32 to vector<8x128xf32>
    %136 = arith.mulf %133, %135 : vector<8x128xf32>
    %137 = arith.addf %121, %136 : vector<8x128xf32>
    %c16 = arith.constant 16 : index
    %138 = memref.load %arg1[%c16] : memref<41xf32, #tpu.memory_space<smem>>
    %139 = vector.broadcast %138 : f32 to vector<8x128xf32>
    %140 = arith.mulf %4, %139 : vector<8x128xf32>
    %c17 = arith.constant 17 : index
    %141 = memref.load %arg1[%c17] : memref<41xf32, #tpu.memory_space<smem>>
    %142 = vector.broadcast %141 : f32 to vector<8x128xf32>
    %143 = arith.mulf %7, %142 : vector<8x128xf32>
    %144 = arith.addf %140, %143 : vector<8x128xf32>
    %c28 = arith.constant 28 : index
    %145 = memref.load %arg1[%c28] : memref<41xf32, #tpu.memory_space<smem>>
    %146 = vector.broadcast %145 : f32 to vector<8x128xf32>
    %147 = arith.addf %144, %146 : vector<8x128xf32>
    %cst_11 = arith.constant 0.000000e+00 : f32
    %148 = vector.broadcast %cst_11 : f32 to vector<8x128xf32>
    %149 = arith.maximumf %147, %148 : vector<8x128xf32>
    %c38 = arith.constant 38 : index
    %150 = memref.load %arg1[%c38] : memref<41xf32, #tpu.memory_space<smem>>
    %151 = vector.broadcast %150 : f32 to vector<8x128xf32>
    %152 = arith.mulf %149, %151 : vector<8x128xf32>
    %153 = arith.addf %137, %152 : vector<8x128xf32>
    %c18 = arith.constant 18 : index
    %154 = memref.load %arg1[%c18] : memref<41xf32, #tpu.memory_space<smem>>
    %155 = vector.broadcast %154 : f32 to vector<8x128xf32>
    %156 = arith.mulf %4, %155 : vector<8x128xf32>
    %c19 = arith.constant 19 : index
    %157 = memref.load %arg1[%c19] : memref<41xf32, #tpu.memory_space<smem>>
    %158 = vector.broadcast %157 : f32 to vector<8x128xf32>
    %159 = arith.mulf %7, %158 : vector<8x128xf32>
    %160 = arith.addf %156, %159 : vector<8x128xf32>
    %c29 = arith.constant 29 : index
    %161 = memref.load %arg1[%c29] : memref<41xf32, #tpu.memory_space<smem>>
    %162 = vector.broadcast %161 : f32 to vector<8x128xf32>
    %163 = arith.addf %160, %162 : vector<8x128xf32>
    %cst_12 = arith.constant 0.000000e+00 : f32
    %164 = vector.broadcast %cst_12 : f32 to vector<8x128xf32>
    %165 = arith.maximumf %163, %164 : vector<8x128xf32>
    %c39 = arith.constant 39 : index
    %166 = memref.load %arg1[%c39] : memref<41xf32, #tpu.memory_space<smem>>
    %167 = vector.broadcast %166 : f32 to vector<8x128xf32>
    %168 = arith.mulf %165, %167 : vector<8x128xf32>
    %169 = arith.addf %153, %168 : vector<8x128xf32>
    %c0_13 = arith.constant 0 : index
    %170 = arith.index_cast %1 : i32 to index
    %c0_14 = arith.constant 0 : index
    %171 = vector.load %arg3[%c0_13, %170, %c0_14] : memref<1x8x128xf32, #tpu.memory_space<vmem>>, vector<1x8x128xf32>
    %172 = vector.shape_cast %171 : vector<1x8x128xf32> to vector<8x128xf32>
    %173 = vector.shape_cast %169 : vector<8x128xf32> to vector<1x8x128xf32>
    tpu.vector_store %arg3[%c0_13, %170, %c0_14], %173 {strides = array<i32>} : memref<1x8x128xf32, #tpu.memory_space<vmem>>, vector<1x8x128xf32>,
    %c1_i32 = arith.constant 1 : i32
    return
  }
  func.func @transform_0(%arg0: i32) -> i32 {
    %c0_i32 = arith.constant 0 : i32
    %c0_i32_0 = arith.constant 0 : i32
    return %c0_i32 : i32
  }
  func.func @transform_1(%arg0: i32) -> (i32, i32, i32) {
    %c0_i32 = arith.constant 0 : i32
    %c0_i32_0 = arith.constant 0 : i32
    %c0_i32_1 = arith.constant 0 : i32
    return %c0_i32, %arg0, %c0_i32_0 : i32, i32, i32
  }
  func.func @transform_2(%arg0: i32) -> (i32, i32, i32) {
    %c0_i32 = arith.constant 0 : i32
    %c0_i32_0 = arith.constant 0 : i32
    %c0_i32_1 = arith.constant 0 : i32
    return %c0_i32, %arg0, %c0_i32_0 : i32, i32, i32
  }
}

</mosaic_0001>

<llo_original>
// kernel: tpu_custom_call.1
$region0: #{tpu_custom_call.1}
  #allocation0 [shape = 'u32[]', space=smem, size = 0x4, offset = 0x4, fixed_abs, tag = 'smem constant byte address 0x4 - core index']
  #allocation1 [shape = 'u32[144,128]{1,0:T(1,128)}', space=vmem, size = 0x12000, scoped, tag = 'internal scratch']
  %s0 = inlined_call_operand.hbm [shape: f32[41], index: 0, kind: input, shape index: {}]
  %s1 = inlined_call_operand.hbm [shape: f32[2,16,128], index: 1, kind: input, shape index: {}]
  %s2 = inlined_call_operand.hbm [shape: f32[1,16,128], index: 2, kind: output, shape index: {}]
  %s3 = sld [smem:[#allocation0]]
  $region49: #{tpu_custom_call.1} parent=0
    _
  %s5 = ssub.s32 1, %s3
  %s6 = scalar_select 0, %s5, %s3
  $region1: #{tpu_custom_call.1} parent=0
    #allocation2 [shape = 'u8[512]{0}', space=smem, size = 0x200, scoped, tag = 'input window, operand 0, single buffered']
    #allocation3 [shape = 's32[2]{0}', space=sflag, size = 0x8, scoped, tag = 'scoped memory for tpu_custom_call.1']
    #allocation4 [shape = 's32[2]{0}', space=sflag, size = 0x8, scoped, tag = 'scoped memory for tpu_custom_call.1']
    #allocation5 [shape = 's32[2]{0}', space=sflag, size = 0x8, scoped, tag = 'scoped memory for tpu_custom_call.1']
    #allocation6 [shape = 'u8[16384]{0}', space=vmem, size = 0x4000, scoped, tag = 'input window, operand 1']
    #allocation7 [shape = 'u8[8192]{0}', space=vmem, size = 0x2000, scoped, tag = 'output window, operand 0']
    %7 = vsyncpa [#allocation5], 0
    %8 = vsyncpa [#allocation3], 0
    %s9 = scalar_lea.sflag [#allocation3], 1
    %10 = vsyncpa %s9, 0
    %11 = vsyncpa [#allocation4], 0
    %s12 = scalar_lea.sflag [#allocation4], 1
    %13 = vsyncpa %s12, 0
    loop: start=0, step=1, limit=4
    $region2: #{tpu_custom_call.1} parent=1 // loop_pre_header
      _
    $region3: #{tpu_custom_call.1} parent=1 // loop_header
      %s15 = sphi 0, %s19
      %p16 = scmp.ge.s32.totalorder %s15, 4
      %s23 = sphi 0, %s23
      %s25 = sphi 0, %s23
      %s26 = sphi 0, %s25
      %s40 = sphi 0, %s26
      %s46 = sphi 0, %s48
      %s49 = sphi 0, %s46
      %s50 = sphi 0, %s49
      %s66 = sphi 0, %s50
      %s72 = sphi 0, %s74
      %s75 = sphi 0, %s72
      %s76 = sphi 0, %s75
      %s92 = sphi 0, %s76
    $region4: #{tpu_custom_call.1} parent=1 // loop_header_branch
      %18 = sbr.rel (%p16) target = $region8
    $region5: #{tpu_custom_call.1} parent=1 // loop_body
      %s20 = ssub.s32 %s15, 1
      %s21 = ssub.s32 %s15, 2
      %s22 = sadd.s32 %s15, 1
      %s24 = sadd.s32 %s23, 1
      %p27 = scmp.eq.s32.totalorder %s15, 1
      %p28 = scmp.ne.s32.totalorder %s23, %s25
      %p29 = scmp.eq.s32.totalorder %s15, 0
      %p30 = por %p28, %p29
      %p31 = scmp.ne.s32.totalorder %s23, %s25
      %p32 = scmp.eq.s32.totalorder %s20, 1
      %p33 = por %p31, %p32
      %p34 = scmp.ne.s32.totalorder %s25, %s26
      %p35 = scmp.eq.s32.totalorder %s20, 0
      %p36 = por %p34, %p35
      %p37 = scmp.ne.s32.totalorder %s25, %s26
      %p38 = scmp.eq.s32.totalorder %s21, 1
      %p39 = por %p37, %p38
      %p41 = scmp.ne.s32.totalorder %s26, %s40
      %p42 = scmp.eq.s32.totalorder %s21, 0
      %p43 = por %p41, %p42
      %s44 = ssub.s32 %s15, %s22
      %p45 = scmp.eq.s32.totalorder %s44, 0
      %s47 = sadd.s32 %s46, 1
      %s48 = scalar_select %p45, %s46, %s47
      %p51 = pneg %p45
      %p52 = scmp.eq.s32.totalorder %s15, 1
      %p53 = por %p51, %p52
      %p54 = scmp.ne.s32.totalorder %s46, %s49
      %p55 = scmp.eq.s32.totalorder %s15, 0
      %p56 = por %p54, %p55
      %p57 = scmp.ne.s32.totalorder %s46, %s49
      %p58 = scmp.eq.s32.totalorder %s20, 1
      %p59 = por %p57, %p58
      %p60 = scmp.ne.s32.totalorder %s49, %s50
      %p61 = scmp.eq.s32.totalorder %s20, 0
      %p62 = por %p60, %p61
      %p63 = scmp.ne.s32.totalorder %s49, %s50
      %p64 = scmp.eq.s32.totalorder %s21, 1
      %p65 = por %p63, %p64
      %p67 = scmp.ne.s32.totalorder %s50, %s66
      %p68 = scmp.eq.s32.totalorder %s21, 0
      %p69 = por %p67, %p68
      %s70 = ssub.s32 %s15, %s22
      %p71 = scmp.eq.s32.totalorder %s70, 0
      %s73 = sadd.s32 %s72, 1
      %s74 = scalar_select %p71, %s72, %s73
      %p77 = pneg %p71
      %p78 = scmp.eq.s32.totalorder %s15, 1
      %p79 = por %p77, %p78
      %p80 = scmp.ne.s32.totalorder %s72, %s75
      %p81 = scmp.eq.s32.totalorder %s15, 0
      %p82 = por %p80, %p81
      %p83 = scmp.ne.s32.totalorder %s72, %s75
      %p84 = scmp.eq.s32.totalorder %s20, 1
      %p85 = por %p83, %p84
      %p86 = scmp.ne.s32.totalorder %s75, %s76
      %p87 = scmp.eq.s32.totalorder %s20, 0
      %p88 = por %p86, %p87
      %p89 = scmp.ne.s32.totalorder %s75, %s76
      %p90 = scmp.eq.s32.totalorder %s21, 1
      %p91 = por %p89, %p90
      %p93 = scmp.ne.s32.totalorder %s76, %s92
      %p94 = scmp.eq.s32.totalorder %s21, 0
      %p95 = por %p93, %p94
      %p96 = scmp.le.s32.totalorder 1, %s15
      %p97 = scmp.lt.s32.totalorder %s15, 3
      %p98 = pnand %p96, %p97
      %p99 = pneg %p98
      // Predicated region
      $region9: #{tpu_custom_call.1} parent=5 // pred_check
        _
      $region10: #{tpu_custom_call.1} parent=5 // pred_check_branch
        %101 = sbr.rel (%p98) target = $region12
      $region11: #{tpu_custom_call.1} parent=5 // pred_region
        %s102 = ssub.s32 %s15, 1
        // Predicated region
        $region13: #{tpu_custom_call.1} parent=11 // pred_check
          %p103 = pneg %p36
        $region14: #{tpu_custom_call.1} parent=11 // pred_check_branch
          %105 = sbr.rel (%p103) target = $region16
        $region15: #{tpu_custom_call.1} parent=11 // pred_region
          %s107 = ssub.s32 16, 16
          %108 = vsyncadd [#allocation5], %s107
          %111 = dma.hbm_to_smem %s0, 16, [#allocation2], [#allocation5]
        $region16: #{tpu_custom_call.1} parent=11 // pred_fallthru
          _
      $region12: #{tpu_custom_call.1} parent=5 // pred_fallthru
        _
      %p112 = scmp.lt.s32.totalorder %s15, 2
      // Predicated region
      $region17: #{tpu_custom_call.1} parent=5 // pred_check
        %p113 = pneg %p112
      $region18: #{tpu_custom_call.1} parent=5 // pred_check_branch
        %115 = sbr.rel (%p113) target = $region20
      $region19: #{tpu_custom_call.1} parent=5 // pred_region
        // Predicated region
        $region21: #{tpu_custom_call.1} parent=19 // pred_check
          %p116 = pneg %p56
        $region22: #{tpu_custom_call.1} parent=19 // pred_check_branch
          %118 = sbr.rel (%p116) target = $region24
        $region23: #{tpu_custom_call.1} parent=19 // pred_region
          %s119 = sand.u32 %s46, 1
          %s120 = scalar_lea.sflag [#allocation3], %s119
          %s121 = sand.u32 %s46, 1
          %s122 = smul.addr %s121, 16
          %s123 = scalar_lea.vmem [#allocation6], %s122
          %s125 = ssub.s32 256, 256
          %126 = vsyncadd %s120, %s125
          %s127 = smul.addr %s15, 128
          %s128 = scalar_lea.hbm %s1, %s127
          %s129 = sshll.u32 %s123, 4
          %s130 = int_to_ptr.vmem [resolvable:$true] %s129
          %135 = dma.hbm_to_vmem [thread:$0]  %s128, 256, %s130, %s120, 256, 128, 8
        $region24: #{tpu_custom_call.1} parent=19 // pred_fallthru
          _
      $region20: #{tpu_custom_call.1} parent=5 // pred_fallthru
        _
      %p136 = scmp.le.s32.totalorder 1, %s15
      %p137 = scmp.lt.s32.totalorder %s15, 3
      %p138 = pnand %p136, %p137
      %p139 = pneg %p138
      // Predicated region
      $region25: #{tpu_custom_call.1} parent=5 // pred_check
        _
      $region26: #{tpu_custom_call.1} parent=5 // pred_check_branch
        %141 = sbr.rel (%p138) target = $region28
      $region27: #{tpu_custom_call.1} parent=5 // pred_region
        %s142 = ssub.s32 %s15, 1
        // Predicated region
        $region29: #{tpu_custom_call.1} parent=27 // pred_check
          %p143 = pneg %p36
        $region30: #{tpu_custom_call.1} parent=27 // pred_check_branch
          %145 = sbr.rel (%p143) target = $region32
        $region31: #{tpu_custom_call.1} parent=27 // pred_region
          %146 = dma.done [#allocation5], 16
        $region32: #{tpu_custom_call.1} parent=27 // pred_fallthru
          _
        %s147 = sand.u32 %s49, 1
        %s148 = scalar_lea.sflag [#allocation3], %s147
        %s149 = sand.u32 %s49, 1
        %s150 = smul.addr %s149, 16
        %s151 = scalar_lea.vmem [#allocation6], %s150
        // Predicated region
        $region33: #{tpu_custom_call.1} parent=27 // pred_check
          %p152 = pneg %p62
        $region34: #{tpu_custom_call.1} parent=27 // pred_check_branch
          %154 = sbr.rel (%p152) target = $region36
        $region35: #{tpu_custom_call.1} parent=27 // pred_region
          %155 = dma.done %s148, 256
        $region36: #{tpu_custom_call.1} parent=27 // pred_fallthru
          _
        %156 = sfence
        %p157 = pneg %p36
        %p158 = pneg %p33
        %s159 = sand.u32 %s49, 1
        %s160 = scalar_lea.sflag [#allocation3], %s159
        %s161 = sand.u32 %s49, 1
        %s162 = smul.addr %s161, 16
        %s163 = scalar_lea.vmem [#allocation6], %s162
        %p164 = pneg %p62
        %p165 = pneg %p59
        %p166 = pneg %p88
        %p167 = pneg %p85
        %s168 = sand.u32 %s75, 1
        %s169 = scalar_lea.sflag [#allocation4], %s168
        %s170 = sand.u32 %s75, 1
        %s171 = smul.addr %s170, 8
        %s172 = scalar_lea.vmem [#allocation7], %s171
        %v173 = vld [vmem:[%s151] sm:$0xff]
        %s174 = sadd.s32 0, 8
        %s175 = scalar_lea.vmem %s151, %s174 [#allocation6]
        %v176 = vld [vmem:[%s175] sm:$0xff]
        %s177 = sld [smem:[#allocation2 + $0x28]]
        %v178 = vstv %s177
        %s179 = sld [smem:[#allocation2]]
        %v180 = vstv %s179
        %v181 = vmul.f32 %v173, %v180
        %s182 = sld [smem:[#allocation2 + $0x1]]
        %v183 = vstv %s182
        %v184 = vmul.f32 %v176, %v183
        %v185 = vadd.f32 %v181, %v184
        %s186 = sld [smem:[#allocation2 + $0x14]]
        %v187 = vstv %s186
        %v188 = vadd.f32 %v185, %v187
        %v189 = vmax.f32 %v188, 0.0
        %s190 = sld [smem:[#allocation2 + $0x1e]]
        %v191 = vstv %s190
        %v192 = vmul.f32 %v189, %v191
        %v193 = vadd.f32 %v178, %v192
        %s194 = sld [smem:[#allocation2 + $0x2]]
        %v195 = vstv %s194
        %v196 = vmul.f32 %v173, %v195
        %s197 = sld [smem:[#allocation2 + $0x3]]
        %v198 = vstv %s197
        %v199 = vmul.f32 %v176, %v198
        %v200 = vadd.f32 %v196, %v199
        %s201 = sld [smem:[#allocation2 + $0x15]]
        %v202 = vstv %s201
        %v203 = vadd.f32 %v200, %v202
        %v204 = vmax.f32 %v203, 0.0
        %s205 = sld [smem:[#allocation2 + $0x1f]]
        %v206 = vstv %s205
        %v207 = vmul.f32 %v204, %v206
        %v208 = vadd.f32 %v193, %v207
        %s209 = sld [smem:[#allocation2 + $0x4]]
        %v210 = vstv %s209
        %v211 = vmul.f32 %v173, %v210
        %s212 = sld [smem:[#allocation2 + $0x5]]
        %v213 = vstv %s212
        %v214 = vmul.f32 %v176, %v213
        %v215 = vadd.f32 %v211, %v214
        %s216 = sld [smem:[#allocation2 + $0x16]]
        %v217 = vstv %s216
        %v218 = vadd.f32 %v215, %v217
        %v219 = vmax.f32 %v218, 0.0
        %s220 = sld [smem:[#allocation2 + $0x20]]
        %v221 = vstv %s220
        %v222 = vmul.f32 %v219, %v221
        %v223 = vadd.f32 %v208, %v222
        %s224 = sld [smem:[#allocation2 + $0x6]]
        %v225 = vstv %s224
        %v226 = vmul.f32 %v173, %v225
        %s227 = sld [smem:[#allocation2 + $0x7]]
        %v228 = vstv %s227
        %v229 = vmul.f32 %v176, %v228
        %v230 = vadd.f32 %v226, %v229
        %s231 = sld [smem:[#allocation2 + $0x17]]
        %v232 = vstv %s231
        %v233 = vadd.f32 %v230, %v232
        %v234 = vmax.f32 %v233, 0.0
        %s235 = sld [smem:[#allocation2 + $0x21]]
        %v236 = vstv %s235
        %v237 = vmul.f32 %v234, %v236
        %v238 = vadd.f32 %v223, %v237
        %s239 = sld [smem:[#allocation2 + $0x8]]
        %v240 = vstv %s239
        %v241 = vmul.f32 %v173, %v240
        %s242 = sld [smem:[#allocation2 + $0x9]]
        %v243 = vstv %s242
        %v244 = vmul.f32 %v176, %v243
        %v245 = vadd.f32 %v241, %v244
        %s246 = sld [smem:[#allocation2 + $0x18]]
        %v247 = vstv %s246
        %v248 = vadd.f32 %v245, %v247
        %v249 = vmax.f32 %v248, 0.0
        %s250 = sld [smem:[#allocation2 + $0x22]]
        %v251 = vstv %s250
        %v252 = vmul.f32 %v249, %v251
        %v253 = vadd.f32 %v238, %v252
        %s254 = sld [smem:[#allocation2 + $0xa]]
        %v255 = vstv %s254
        %v256 = vmul.f32 %v173, %v255
        %s257 = sld [smem:[#allocation2 + $0xb]]
        %v258 = vstv %s257
        %v259 = vmul.f32 %v176, %v258
        %v260 = vadd.f32 %v256, %v259
        %s261 = sld [smem:[#allocation2 + $0x19]]
        %v262 = vstv %s261
        %v263 = vadd.f32 %v260, %v262
        %v264 = vmax.f32 %v263, 0.0
        %s265 = sld [smem:[#allocation2 + $0x23]]
        %v266 = vstv %s265
        %v267 = vmul.f32 %v264, %v266
        %v268 = vadd.f32 %v253, %v267
        %s269 = sld [smem:[#allocation2 + $0xc]]
        %v270 = vstv %s269
        %v271 = vmul.f32 %v173, %v270
        %s272 = sld [smem:[#allocation2 + $0xd]]
        %v273 = vstv %s272
        %v274 = vmul.f32 %v176, %v273
        %v275 = vadd.f32 %v271, %v274
        %s276 = sld [smem:[#allocation2 + $0x1a]]
        %v277 = vstv %s276
        %v278 = vadd.f32 %v275, %v277
        %v279 = vmax.f32 %v278, 0.0
        %s280 = sld [smem:[#allocation2 + $0x24]]
        %v281 = vstv %s280
        %v282 = vmul.f32 %v279, %v281
        %v283 = vadd.f32 %v268, %v282
        %s284 = sld [smem:[#allocation2 + $0xe]]
        %v285 = vstv %s284
        %v286 = vmul.f32 %v173, %v285
        %s287 = sld [smem:[#allocation2 + $0xf]]
        %v288 = vstv %s287
        %v289 = vmul.f32 %v176, %v288
        %v290 = vadd.f32 %v286, %v289
        %s291 = sld [smem:[#allocation2 + $0x1b]]
        %v292 = vstv %s291
        %v293 = vadd.f32 %v290, %v292
        %v294 = vmax.f32 %v293, 0.0
        %s295 = sld [smem:[#allocation2 + $0x25]]
        %v296 = vstv %s295
        %v297 = vmul.f32 %v294, %v296
        %v298 = vadd.f32 %v283, %v297
        %s299 = sld [smem:[#allocation2 + $0x10]]
        %v300 = vstv %s299
        %v301 = vmul.f32 %v173, %v300
        %s302 = sld [smem:[#allocation2 + $0x11]]
        %v303 = vstv %s302
        %v304 = vmul.f32 %v176, %v303
        %v305 = vadd.f32 %v301, %v304
        %s306 = sld [smem:[#allocation2 + $0x1c]]
        %v307 = vstv %s306
        %v308 = vadd.f32 %v305, %v307
        %v309 = vmax.f32 %v308, 0.0
        %s310 = sld [smem:[#allocation2 + $0x26]]
        %v311 = vstv %s310
        %v312 = vmul.f32 %v309, %v311
        %v313 = vadd.f32 %v298, %v312
        %s314 = sld [smem:[#allocation2 + $0x12]]
        %v315 = vstv %s314
        %v316 = vmul.f32 %v173, %v315
        %s317 = sld [smem:[#allocation2 + $0x13]]
        %v318 = vstv %s317
        %v319 = vmul.f32 %v176, %v318
        %v320 = vadd.f32 %v316, %v319
        %s321 = sld [smem:[#allocation2 + $0x1d]]
        %v322 = vstv %s321
        %v323 = vadd.f32 %v320, %v322
        %v324 = vmax.f32 %v323, 0.0
        %s325 = sld [smem:[#allocation2 + $0x27]]
        %v326 = vstv %s325
        %v327 = vmul.f32 %v324, %v326
        %v328 = vadd.f32 %v313, %v327
        %329 = vst [vmem:[%s172] sm:$0xff] %v328
        %s330 = sand.u32 %s75, 1
        %s331 = scalar_lea.sflag [#allocation4], %s330
        %s332 = sand.u32 %s75, 1
        %s333 = smul.addr %s332, 8
        %s334 = scalar_lea.vmem [#allocation7], %s333
        // Predicated region
        $region37: #{tpu_custom_call.1} parent=27 // pred_check
          %p335 = pneg %p85
        $region38: #{tpu_custom_call.1} parent=27 // pred_check_branch
          %337 = sbr.rel (%p335) target = $region40
        $region39: #{tpu_custom_call.1} parent=27 // pred_region
          %s339 = ssub.s32 128, 128
          %340 = vsyncadd %s331, %s339
          %s341 = smul.addr %s20, 128
          %s342 = scalar_lea.hbm %s2, %s341
          %s344 = sshll.u32 %s334, 4
          %s345 = int_to_ptr.vmem [resolvable:$true] %s344
          %347 = dma.vmem_to_hbm [thread:$0]  %s345, 128, %s342, %s331
        $region40: #{tpu_custom_call.1} parent=27 // pred_fallthru
          _
      $region28: #{tpu_custom_call.1} parent=5 // pred_fallthru
        _
      %p348 = scmp.le.s32.totalorder 2, %s15
      // Predicated region
      $region41: #{tpu_custom_call.1} parent=5 // pred_check
        %p349 = pneg %p348
      $region42: #{tpu_custom_call.1} parent=5 // pred_check_branch
        %351 = sbr.rel (%p349) target = $region44
      $region43: #{tpu_custom_call.1} parent=5 // pred_region
        %s352 = ssub.s32 %s15, 2
        // Predicated region
        $region45: #{tpu_custom_call.1} parent=43 // pred_check
          %p353 = pneg %p91
        $region46: #{tpu_custom_call.1} parent=43 // pred_check_branch
          %355 = sbr.rel (%p353) target = $region48
        $region47: #{tpu_custom_call.1} parent=43 // pred_region
          %s356 = sand.u32 %s76, 1
          %s357 = scalar_lea.sflag [#allocation4], %s356
          %s358 = sand.u32 %s76, 1
          %s359 = smul.addr %s358, 8
          %s360 = scalar_lea.vmem [#allocation7], %s359
          %361 = dma.done %s357, 128
        $region48: #{tpu_custom_call.1} parent=43 // pred_fallthru
          _
      $region44: #{tpu_custom_call.1} parent=5 // pred_fallthru
        _
    $region6: #{tpu_custom_call.1} parent=1 // loop_footer
      %s19 = sadd.s32 1, %s15
    $region7: #{tpu_custom_call.1} parent=1 // loop_footer_branch
      %14 = sbr.rel target = $region3
    $region8: #{tpu_custom_call.1} parent=1 // loop_exit
      _
    %362 = vsyncpa [#allocation3], 1
    %s363 = scalar_lea.sflag [#allocation3], 1
    %364 = vsyncpa %s363, 1
    %365 = vsyncpa [#allocation4], 1
    %s366 = scalar_lea.sflag [#allocation4], 1
    %367 = vsyncpa %s366, 1
    %368 = vsyncpa [#allocation5], 1
    %s369 = scalar_lea.sflag [#allocation5], 1
    %370 = vsyncpa %s369, 1

</llo_original>
